<compile_context>
chip_gen: v7x
topology: tpu7x:2x2x1
jax: 0.10.0
libtpu: 0.0.40
codegen_flags: <defaults>
</compile_context>

<pallas_src>
import jax
import jax.numpy as jnp
from jax.experimental import pallas as pl
from jax.experimental.pallas import tpu as pltpu


# Contract the last (dim_data) axis of both operands: (E, D) x (T, D) -> (E, T).
_NT_DIMS = (((1,), (1,)), ((), ()))


def _danet_kernel(x_ref, w1_ref, b1_ref, w2_ref, b2_ref, o_ref):
    """One batch tile.

    x_ref  : (TILE_N, dim_data)    input tile, natural PyTorch layout
    w1_ref : (dim_embed, dim_data) encoder weight (resident across the grid)
    b1_ref : (dim_embed, 1)        encoder bias column (lane-broadcast)
    w2_ref : (dim_embed, 1)        output weight column
    b2_ref : (1, 1) in SMEM        output bias scalar
    o_ref  : (1, TILE_N)           lane-dense output row
    """
    # Layer 1 on the MXU, producing the batch-on-lanes orientation directly:
    # (dim_embed, dim_data) x (TILE_N, dim_data)^T -> (dim_embed, TILE_N) f32.
    h = jax.lax.dot_general(
        w1_ref[...], x_ref[...], _NT_DIMS, preferred_element_type=jnp.float32
    )
    h = jnp.maximum(h + b1_ref[...], 0.0)  # bias + ReLU on the VPU (f32)

    # Layer 2 (dim_embed -> 1): broadcast-multiply by the weight column and
    # reduce over the sublane (dim_embed) axis — VPU + XLU, MXU not needed.
    z = jnp.sum(h * w2_ref[...], axis=0, keepdims=True) + b2_ref[0, 0]
    o_ref[...] = jax.nn.sigmoid(z).astype(o_ref.dtype)


def _auto_tile(dim_data, dim_embed, vmem_budget_bytes):
    """Pick a lane-dense batch tile (multiple of 128) from a VMEM budget."""
    cols_padded = pl.cdiv(dim_data, 128) * 128
    bytes_per_lane = (
        2 * cols_padded * 4      # double-buffered input tile (lane-padded layout)
        + 2 * dim_data * 4       # in-kernel transposed/relayout scratch for x
        + 4 * dim_embed * 4      # h + elementwise f32 temporaries
        + 2 * 8 * 4              # double-buffered (1, TILE) output, 8-sublane padded
    )
    tile = (vmem_budget_bytes // bytes_per_lane) // 128 * 128
    return int(max(512, min(tile, 65536)))


def danet_forward(x, w1, b1, w2, b2, *, max_tile_n=None,
                  vmem_budget_bytes=28 * 1024 * 1024):
    """Forward pass of DAnet_wo_fm_dense.

    x  : (N, dim_data) float32
    w1 : (dim_embed, dim_data)  -- PyTorch nn.Linear weight layout
    b1 : (dim_embed,)
    w2 : (1, dim_embed)
    b2 : (1,)
    Returns (N, 1) float32.
    """
    n, dim_data = x.shape
    dim_embed = w1.shape[0]

    if max_tile_n is None:
        max_tile_n = _auto_tile(dim_data, dim_embed, vmem_budget_bytes)

    if n < 128:
        # Tiny batch: a single block that exactly covers the (sublane-rounded)
        # array; the few padded rows are the only host-side copy ever made.
        tile = max(8, pl.cdiv(n, 8) * 8)
        x_in = x if tile == n else jnp.pad(x, ((0, tile - n), (0, 0)))
        grid = (1,)
    else:
        n_lanes = pl.cdiv(n, 128) * 128
        tile = min(max_tile_n, n_lanes)
        half = (n_lanes // 2) // 128 * 128
        if half >= 128:
            tile = min(tile, half)   # keep >= 2 grid steps so v7x uses both TCs
        tile = max(tile, 128)
        x_in = x                     # no staging copy; ragged last block is masked
        grid = (pl.cdiv(n, tile),)

    out_w = grid[0] * tile           # output padded to whole tiles (cheap, lane-dense)

    # Tiny resident parameters (negligible traffic).
    b1c = b1.reshape(dim_embed, 1).astype(jnp.float32)
    w2c = w2.reshape(dim_embed, 1).astype(jnp.float32)
    b2c = b2.reshape(1, 1).astype(jnp.float32)

    cost = pl.CostEstimate(
        flops=2 * n * dim_embed * (dim_data + 1),
        transcendentals=n,                                   # sigmoid exp per sample
        bytes_accessed=n * (dim_data + 1) * 4
        + (dim_embed * (dim_data + 2) + 1) * 4,
    )

    out = pl.pallas_call(
        _danet_kernel,
        out_shape=jax.ShapeDtypeStruct((1, out_w), jnp.float32),
        grid=grid,
        in_specs=[
            pl.BlockSpec((tile, dim_data), lambda i: (i, 0)),       # x tile (natural layout)
            pl.BlockSpec((dim_embed, dim_data), lambda i: (0, 0)),  # W1 resident
            pl.BlockSpec((dim_embed, 1), lambda i: (0, 0)),         # b1 column resident
            pl.BlockSpec((dim_embed, 1), lambda i: (0, 0)),         # w2 column resident
            pl.BlockSpec(memory_space=pltpu.MemorySpace.SMEM),      # b2 scalar
        ],
        out_specs=pl.BlockSpec((1, tile), lambda i: (0, i)),        # lane-dense output row
        compiler_params=pltpu.CompilerParams(
            dimension_semantics=("parallel",),   # batch tiles independent -> megacore
            vmem_limit_bytes=48 * 1024 * 1024,   # headroom on v5e/v6e, safe on v7x (64 MiB)
        ),
        cost_estimate=cost,
    )(x_in, w1, b1c, w2c, b2c)

    # Cheap (N*4 B) reshape back to the PyTorch (N, 1) output.
    return out[0, :n].reshape(n, 1)


def danet_reference(x, w1, b1, w2, b2):
    """Pure-JAX reference matching the PyTorch module semantics."""
    h = jnp.maximum(x @ w1.T + b1, 0.0)
    return jax.nn.sigmoid(h @ w2.T + b2)


def init_params(key, dim_data, dim_embed):
    """nn.Linear-style uniform(-1/sqrt(fan_in), +1/sqrt(fan_in)) init, PyTorch layouts."""
    k1, k2, k3, k4 = jax.random.split(key, 4)
    bound1 = 1.0 / jnp.sqrt(jnp.float32(dim_data))
    bound2 = 1.0 / jnp.sqrt(jnp.float32(dim_embed))
    w1 = jax.random.uniform(k1, (dim_embed, dim_data), jnp.float32, -bound1, bound1)
    b1 = jax.random.uniform(k2, (dim_embed,), jnp.float32, -bound1, bound1)
    w2 = jax.random.uniform(k3, (1, dim_embed), jnp.float32, -bound2, bound2)
    b2 = jax.random.uniform(k4, (1,), jnp.float32, -bound2, bound2)
    return w1, b1, w2, b2


if __name__ == "__main__":
    batch, dim_data, dim_embed = 8, 16, 32

    key = jax.random.PRNGKey(0)
    k_x, k_p, k_x2 = jax.random.split(key, 3)
    x = jax.random.normal(k_x, (batch, dim_data), dtype=jnp.float32)
    w1, b1, w2, b2 = init_params(k_p, dim_data, dim_embed)

    fwd = jax.jit(danet_forward)

    # Small-shape correctness check (single-block path).
    out = jax.block_until_ready(fwd(x, w1, b1, w2, b2))
    ref = danet_reference(x, w1, b1, w2, b2)
    assert out.shape == (batch, 1)
    assert jnp.allclose(out, ref, atol=2e-5, rtol=1e-5)

    # Ragged tail: N not a multiple of the 128-lane tile, no host-side pad/copy.
    x2 = jax.random.normal(k_x2, (300, dim_data), dtype=jnp.float32)
    out2 = jax.block_until_ready(fwd(x2, w1, b1, w2, b2))
    ref2 = danet_reference(x2, w1, b1, w2, b2)
    assert out2.shape == (300, 1)
    assert jnp.allclose(out2, ref2, atol=2e-5, rtol=1e-5)

    print("KERNEL_OK")
</pallas_src>

<mosaic_0001>
module attributes {stable_mosaic.version = 11 : i64} {
  func.func @_danet_kernel(%arg0: i32, %arg1: memref<8x16xf32, #tpu.memory_space<vmem>>, %arg2: memref<32x16xf32, #tpu.memory_space<vmem>>, %arg3: memref<32x1xf32, #tpu.memory_space<vmem>>, %arg4: memref<32x1xf32, #tpu.memory_space<vmem>>, %arg5: memref<1x1xf32, #tpu.memory_space<smem>>, %arg6: memref<1x8xf32, #tpu.memory_space<vmem>>) attributes {dimension_semantics = [#tpu.dimension_semantics<parallel>], iteration_bounds = array<i64: 1>, scalar_prefetch = 0 : i64, scratch_operands = 0 : i64, tpu.core_type = #tpu.core_type<tc>, window_params = [{transform_indices = @transform_0, window_bounds = array<i64: 8, 16>}, {pipeline_mode = #tpu.pipeline_mode<synchronous>, transform_indices = @transform_1, window_bounds = array<i64: 32, 16>}, {pipeline_mode = #tpu.pipeline_mode<synchronous>, transform_indices = @transform_2, window_bounds = array<i64: 32, 1>}, {pipeline_mode = #tpu.pipeline_mode<synchronous>, transform_indices = @transform_3, window_bounds = array<i64: 32, 1>}, {transform_indices = @transform_4, window_bounds = array<i64: 1, 1>}, {transform_indices = @transform_5, window_bounds = array<i64: 1, 8>}]} {
    %c0 = arith.constant 0 : index
    %c0_0 = arith.constant 0 : index
    %0 = vector.load %arg2[%c0, %c0_0] : memref<32x16xf32, #tpu.memory_space<vmem>>, vector<32x16xf32>
    %c0_1 = arith.constant 0 : index
    %c0_2 = arith.constant 0 : index
    %1 = vector.load %arg1[%c0_1, %c0_2] : memref<8x16xf32, #tpu.memory_space<vmem>>, vector<8x16xf32>
    %cst = arith.constant dense<0.000000e+00> : vector<32x8xf32>
    %2 = tpu.matmul %0, %1, %cst {dimension_numbers = #tpu.dot_dimension_numbers<[1], [1], [0], [0], [0, 0, 1, 0], [], []>} : vector<32x16xf32>, vector<8x16xf32>, vector<32x8xf32> -> vector<32x8xf32>
    %c0_3 = arith.constant 0 : index
    %c0_4 = arith.constant 0 : index
    %3 = vector.load %arg3[%c0_3, %c0_4] : memref<32x1xf32, #tpu.memory_space<vmem>>, vector<32x1xf32>
    %4 = vector.broadcast %3 : vector<32x1xf32> to vector<32x8xf32>
    %5 = arith.addf %2, %4 : vector<32x8xf32>
    %cst_5 = arith.constant 0.000000e+00 : f32
    %6 = vector.broadcast %cst_5 : f32 to vector<32x8xf32>
    %7 = arith.maximumf %5, %6 : vector<32x8xf32>
    %c0_6 = arith.constant 0 : index
    %c0_7 = arith.constant 0 : index
    %8 = vector.load %arg4[%c0_6, %c0_7] : memref<32x1xf32, #tpu.memory_space<vmem>>, vector<32x1xf32>
    %9 = vector.broadcast %8 : vector<32x1xf32> to vector<32x8xf32>
    %10 = arith.mulf %7, %9 : vector<32x8xf32>
    %cst_8 = arith.constant dense<0.000000e+00> : vector<8xf32>
    %11 = vector.multi_reduction <add>, %10, %cst_8 [0] : vector<32x8xf32> to vector<8xf32>
    %12 = vector.shape_cast %11 : vector<8xf32> to vector<1x8xf32>
    %c0_9 = arith.constant 0 : index
    %c0_10 = arith.constant 0 : index
    %13 = memref.load %arg5[%c0_9, %c0_10] : memref<1x1xf32, #tpu.memory_space<smem>>
    %14 = vector.broadcast %13 : f32 to vector<1x8xf32>
    %15 = arith.addf %12, %14 : vector<1x8xf32>
    %16 = arith.negf %15 : vector<1x8xf32>
    %17 = math.exp %16 : vector<1x8xf32>
    %cst_11 = arith.constant 1.000000e+00 : f32
    %18 = vector.broadcast %cst_11 : f32 to vector<1x8xf32>
    %19 = arith.addf %18, %17 : vector<1x8xf32>
    %20 = arith.divf %18, %19 : vector<1x8xf32>
    %c0_12 = arith.constant 0 : index
    %c0_13 = arith.constant 0 : index
    %21 = vector.load %arg6[%c0_12, %c0_13] : memref<1x8xf32, #tpu.memory_space<vmem>>, vector<1x8xf32>
    tpu.vector_store %arg6[%c0_12, %c0_13], %20 {strides = array<i32>} : memref<1x8xf32, #tpu.memory_space<vmem>>, vector<1x8xf32>,
    return
  }
  func.func @transform_0(%arg0: i32) -> (i32, i32) {
    %c0_i32 = arith.constant 0 : i32
    %c0_i32_0 = arith.constant 0 : i32
    return %arg0, %c0_i32 : i32, i32
  }
  func.func @transform_1(%arg0: i32) -> (i32, i32) {
    %c0_i32 = arith.constant 0 : i32
    %c0_i32_0 = arith.constant 0 : i32
    %c0_i32_1 = arith.constant 0 : i32
    return %c0_i32, %c0_i32_0 : i32, i32
  }
  func.func @transform_2(%arg0: i32) -> (i32, i32) {
    %c0_i32 = arith.constant 0 : i32
    %c0_i32_0 = arith.constant 0 : i32
    %c0_i32_1 = arith.constant 0 : i32
    return %c0_i32, %c0_i32_0 : i32, i32
  }
  func.func @transform_3(%arg0: i32) -> (i32, i32) {
    %c0_i32 = arith.constant 0 : i32
    %c0_i32_0 = arith.constant 0 : i32
    %c0_i32_1 = arith.constant 0 : i32
    return %c0_i32, %c0_i32_0 : i32, i32
  }
  func.func @transform_4(%arg0: i32) -> (i32, i32) {
    %c0_i32 = arith.constant 0 : i32
    %c0_i32_0 = arith.constant 0 : i32
    %c0_i32_1 = arith.constant 0 : i32
    return %c0_i32, %c0_i32_0 : i32, i32
  }
  func.func @transform_5(%arg0: i32) -> (i32, i32) {
    %c0_i32 = arith.constant 0 : i32
    %c0_i32_0 = arith.constant 0 : i32
    return %c0_i32, %arg0 : i32, i32
  }
}

</mosaic_0001>

<llo_original>
// kernel: danet_forward.1
$region0: #{danet_forward.1}
  #allocation0 [shape = 'u32[]', space=smem, size = 0x4, offset = 0x4, fixed_abs, tag = 'smem constant byte address 0x4 - core index']
  #allocation1 [shape = 'u32[144,128]{1,0:T(1,128)}', space=vmem, size = 0x12000, scoped, tag = 'internal scratch']
  #allocation2 [shape = 'f32[1,1]{1,0:T(1,128)S(6)}', space=smem, size = 0x200, scoped, tag = 'scoped memory for danet_forward.1']
  %s0 = inlined_call_operand.vmem [shape: f32[8,16], index: 0, kind: input, shape index: {}]
  %s1 = inlined_call_operand.vmem [shape: f32[32,16], index: 1, kind: input, shape index: {}]
  %s2 = inlined_call_operand.vmem [shape: f32[32,1], index: 2, kind: input, shape index: {}]
  %s3 = inlined_call_operand.vmem [shape: f32[32,1], index: 3, kind: input, shape index: {}]
  %s4 = inlined_call_operand.<no memory space> [shape: f32[1,1], index: 4, kind: input, shape index: {}]
  %s5 = inlined_call_operand.hbm [shape: f32[1,8], index: 5, kind: output, shape index: {}]
  %s6 = sld [smem:[#allocation0]]
  $region30: #{danet_forward.1} parent=0
    _
  %s8 = ssub.s32 1, %s6
  %s9 = scalar_select 0, %s8, %s6
  %10 = sst [smem:[#allocation2]] %s4
  $region1: #{danet_forward.1} parent=0
    #allocation3 [shape = 'u8[512]{0}', space=vmem, size = 0x400, scoped, tag = 'output window, operand 0, single buffered']
    #allocation4 [shape = 's32[1]{0}', space=sflag, size = 0x4, scoped, tag = 'scoped memory for danet_forward.1']
    %11 = vsyncpa [#allocation4], 0
    // Predicated region
    $region2: #{danet_forward.1} parent=1 // pred_check
      _
    $region3: #{danet_forward.1} parent=1 // pred_check_branch
      %13 = sbr.rel (0) target = $region5
    $region4: #{danet_forward.1} parent=1 // pred_region
      _
    $region5: #{danet_forward.1} parent=1 // pred_fallthru
      _
    // Predicated region
    $region6: #{danet_forward.1} parent=1 // pred_check
      _
    $region7: #{danet_forward.1} parent=1 // pred_check_branch
      %15 = sbr.rel (0) target = $region9
    $region8: #{danet_forward.1} parent=1 // pred_region
      _
    $region9: #{danet_forward.1} parent=1 // pred_fallthru
      _
    // Predicated region
    $region10: #{danet_forward.1} parent=1 // pred_check
      _
    $region11: #{danet_forward.1} parent=1 // pred_check_branch
      %17 = sbr.rel (0) target = $region13
    $region12: #{danet_forward.1} parent=1 // pred_region
      _
    $region13: #{danet_forward.1} parent=1 // pred_fallthru
      _
    // Predicated region
    $region14: #{danet_forward.1} parent=1 // pred_check
      _
    $region15: #{danet_forward.1} parent=1 // pred_check_branch
      %19 = sbr.rel (0) target = $region17
    $region16: #{danet_forward.1} parent=1 // pred_region
      _
    $region17: #{danet_forward.1} parent=1 // pred_fallthru
      _
    // Predicated region
    $region18: #{danet_forward.1} parent=1 // pred_check
      _
    $region19: #{danet_forward.1} parent=1 // pred_check_branch
      %21 = sbr.rel (0) target = $region21
    $region20: #{danet_forward.1} parent=1 // pred_region
      _
    $region21: #{danet_forward.1} parent=1 // pred_fallthru
      _
    %v22 = vld [vmem:[%s1] sm:$0xff]
    %v23 = vld [vmem:[%s1 + $0x8] sm:$0xff]
    %v24 = vld [vmem:[%s1 + $0x10] sm:$0xff]
    %v25 = vld [vmem:[%s1 + $0x18] sm:$0xff]
    %v26 = vld [vmem:[%s0] sm:$0xff]
    %v27 = vld [vmem:[%s2] sm:$0xff]
    %v28 = vld [vmem:[%s2 + $0x8] sm:$0xff]
    %v29 = vld [vmem:[%s2 + $0x10] sm:$0xff]
    %v30 = vld [vmem:[%s2 + $0x18] sm:$0xff]
    %32 = vset.pattern.permute.xlu0 0
    %33 = vperm.xlu0 %32, %v27
    %v34 = vpop.permute.xlu0 %33
    %37 = vset.pattern.permute.xlu0 0
    %38 = vperm.xlu0 %37, %v28
    %v39 = vpop.permute.xlu0 %38
    %42 = vset.pattern.permute.xlu0 0
    %43 = vperm.xlu0 %42, %v29
    %v44 = vpop.permute.xlu0 %43
    %47 = vset.pattern.permute.xlu0 0
    %48 = vperm.xlu0 %47, %v30
    %v49 = vpop.permute.xlu0 %48
    %vm51 = vcmask 130048
    %v53 = vsel %vm51, %v22, 0
    %v56 = vsel %vm51, %v23, 0
    %v59 = vsel %vm51, %v24, 0
    %v62 = vsel %vm51, %v25, 0
    %v65 = vsel %vm51, %v26, 0
    %67 = vmatprep.subr.mxu0 0.0
    %68 = vmatpush1.xpose.msra.mxu0 %v65
    %69 = vmatprep.subr.mxu0 0.0
    %70 = vmatpush1.xpose.msra.mxu0 0.0
    %71 = vmatprep.subr.mxu0 0.0
    %72 = vmatpush1.xpose.msra.mxu0 0.0
    %73 = vmatprep.subr.mxu0 0.0
    %74 = vmatpush1.xpose.msra.mxu0 0.0
    %75 = vmatprep.subr.mxu0 0.0
    %76 = vmatpush1.xpose.msra.mxu0 0.0
    %77 = vmatprep.subr.mxu0 0.0
    %78 = vmatpush1.xpose.msra.mxu0 0.0
    %79 = vmatprep.subr.mxu0 0.0
    %80 = vmatpush1.xpose.msra.mxu0 0.0
    %81 = vmatprep.subr.mxu0 0.0
    %82 = vmatpush1.xpose.msra.mxu0 0.0
    %83 = vmatprep.subr.mxu0 0.0
    %84 = vmatpush1.xpose.msra.mxu0 0.0
    %85 = vmatprep.subr.mxu0 0.0
    %86 = vmatpush1.xpose.msra.mxu0 0.0
    %87 = vmatprep.subr.mxu0 0.0
    %88 = vmatpush1.xpose.msra.mxu0 0.0
    %89 = vmatprep.subr.mxu0 0.0
    %90 = vmatpush1.xpose.msra.mxu0 0.0
    %91 = vmatprep.subr.mxu0 0.0
    %92 = vmatpush1.xpose.msra.mxu0 0.0
    %93 = vmatprep.subr.mxu0 0.0
    %94 = vmatpush1.xpose.msra.mxu0 0.0
    %95 = vmatprep.subr.mxu0 0.0
    %96 = vmatpush1.xpose.msra.mxu0 0.0
    %97 = vmatprep.subr.mxu0 0.0
    %98 = vmatpush1.xpose.msra.mxu0 0.0
    %99 = vmatprep.subr.mxu0 0.0
    %100 = vmatpush1.xpose.msra.mxu0 0.0
    %101 = vmatprep.subr.mxu0 0.0
    %102 = vmatpush1.xpose.msra.mxu0 0.0
    %103 = vmatprep.subr.mxu0 0.0
    %104 = vmatpush1.xpose.msra.mxu0 0.0
    %105 = vmatprep.subr.mxu0 0.0
    %106 = vmatpush1.xpose.msra.mxu0 0.0
    %107 = vmatprep.subr.mxu0 0.0
    %108 = vmatpush1.xpose.msra.mxu0 0.0
    %109 = vmatprep.subr.mxu0 0.0
    %110 = vmatpush1.xpose.msra.mxu0 0.0
    %111 = vmatprep.subr.mxu0 0.0
    %112 = vmatpush1.xpose.msra.mxu0 0.0
    %113 = vmatprep.subr.mxu0 0.0
    %114 = vmatpush1.xpose.msra.mxu0 0.0
    %115 = vmatprep.subr.mxu0 0.0
    %116 = vmatpush1.xpose.msra.mxu0 0.0
    %117 = vmatprep.subr.mxu0 0.0
    %118 = vmatpush1.xpose.msra.mxu0 0.0
    %119 = vmatprep.subr.mxu0 0.0
    %120 = vmatpush1.xpose.msra.mxu0 0.0
    %121 = vmatprep.subr.mxu0 0.0
    %122 = vmatpush1.xpose.msra.mxu0 0.0
    %123 = vmatprep.subr.mxu0 0.0
    %124 = vmatpush1.xpose.msra.mxu0 0.0
    %125 = vmatprep.subr.mxu0 0.0
    %126 = vmatpush1.xpose.msra.mxu0 0.0
    %127 = vmatprep.subr.mxu0 0.0
    %128 = vmatpush1.xpose.msra.mxu0 0.0
    %129 = vmatprep.subr.mxu0 0.0
    %130 = vmatpush1.xpose.msra.mxu0 0.0
    %131 = vmatprep.mubr.f32.mxu0 0.0
    %132 = vmatmul.mubr.f32.gmra.mrb[0].mxu0 %v53
    %v133 = vpop.f32.mrb[0].mxu0
    %v134 = vadd.f32 %v34, %v133
    %v135 = vpop.f32.mrb[0].mxu0
    %136 = vmatprep.mubr.f32.mxu0 0.0
    %137 = vmatmul.mubr.f32.gmra.mrb[0].mxu0 %v56
    %v138 = vpop.f32.mrb[0].mxu0
    %v139 = vadd.f32 %v39, %v138
    %v140 = vpop.f32.mrb[0].mxu0
    %141 = vmatprep.mubr.f32.mxu0 0.0
    %142 = vmatmul.mubr.f32.gmra.mrb[0].mxu0 %v59
    %v143 = vpop.f32.mrb[0].mxu0
    %v144 = vadd.f32 %v44, %v143
    %v145 = vpop.f32.mrb[0].mxu0
    %146 = vmatprep.mubr.f32.mxu0 0.0
    %147 = vmatmul.mubr.f32.gmra.mrb[0].mxu0 %v62
    %v148 = vpop.f32.mrb[0].mxu0
    %v149 = vadd.f32 %v49, %v148
    %v150 = vpop.f32.mrb[0].mxu0
    %151 = vdwg.mxu0
    %v152 = vmax.f32 %v134, 0.0
    %v153 = vmax.f32 %v139, 0.0
    %v154 = vmax.f32 %v144, 0.0
    %v155 = vmax.f32 %v149, 0.0
    %v156 = vld [vmem:[%s3] sm:$0xff]
    %v157 = vld [vmem:[%s3 + $0x8] sm:$0xff]
    %v158 = vld [vmem:[%s3 + $0x10] sm:$0xff]
    %v159 = vld [vmem:[%s3 + $0x18] sm:$0xff]
    %161 = vset.pattern.permute.xlu0 0
    %162 = vperm.xlu0 %161, %v156
    %v163 = vpop.permute.xlu0 %162
    %166 = vset.pattern.permute.xlu0 0
    %167 = vperm.xlu0 %166, %v157
    %v168 = vpop.permute.xlu0 %167
    %171 = vset.pattern.permute.xlu0 0
    %172 = vperm.xlu0 %171, %v158
    %v173 = vpop.permute.xlu0 %172
    %176 = vset.pattern.permute.xlu0 0
    %177 = vperm.xlu0 %176, %v159
    %v178 = vpop.permute.xlu0 %177
    %v180 = vmul.f32 %v152, %v163
    %v181 = vmul.f32 %v153, %v168
    %v182 = vmul.f32 %v154, %v173
    %v183 = vmul.f32 %v155, %v178
    %vm184 = vcmask 64512
    %v185 = vsel %vm184, %v180, 0.0
    %v186 = vsel %vm184, %v181, 0.0
    %v187 = vadd.f32 %v185, %v186
    %v188 = vsel %vm184, %v182, 0.0
    %v189 = vadd.f32 %v187, %v188
    %v190 = vsel %vm184, %v183, 0.0
    %v191 = vadd.f32 %v189, %v190
    %v192 = vrot.slane %v191, 4
    %v193 = vadd.f32 %v191, %v192
    %v194 = vrot.slane %v193, 2
    %v195 = vadd.f32 %v193, %v194
    %v196 = vrot.slane %v195, 1
    %v197 = vadd.f32 %v195, %v196
    %s198 = sld [smem:[#allocation2]]
    %v199 = vstv %s198
    %v200 = vadd.f32 %v197, %v199
    %v201 = vxor.u32 %v200, 2147483648
    %v202 = vmul.f32 %v201, 1.442695
    %v203 = vpow.pop %v202
    %v204 = vadd.f32 %v203, 1.0
    %v205 = vrcp.pop %v204
    %v206 = vmul.f32 1.0, %v205
    %vm207 = vcmask 57344
    %208 = vst.msk [vmem:[#allocation3] sm:$0x1] %vm207, %v206
    // Predicated region
    $region22: #{danet_forward.1} parent=1 // pred_check
      _
    $region23: #{danet_forward.1} parent=1 // pred_check_branch
      %210 = sbr.rel (0) target = $region25
    $region24: #{danet_forward.1} parent=1 // pred_region
      %s212 = ssub.s32 16, 16
      %213 = vsyncadd [#allocation4], %s212
      %s215 = sshll.u32 [#allocation3], 4
      %s216 = int_to_ptr.vmem [resolvable:$true] %s215
      %218 = dma.vmem_to_hbm [thread:$0]  %s216, 16, %s5, [#allocation4]
    $region25: #{danet_forward.1} parent=1 // pred_fallthru
      _
    // Predicated region
    $region26: #{danet_forward.1} parent=1 // pred_check
      _
    $region27: #{danet_forward.1} parent=1 // pred_check_branch
      %220 = sbr.rel (0) target = $region29
    $region28: #{danet_forward.1} parent=1 // pred_region
      %221 = dma.done [#allocation4], 16
    $region29: #{danet_forward.1} parent=1 // pred_fallthru
      _
    %222 = vsyncpa [#allocation4], 1

</llo_original>
